<compile_context>
chip_gen: v6e
topology: v6e:2x2x1
jax: 0.10.0
libtpu: 0.0.40
codegen_flags: <defaults>
</compile_context>

<pallas_src>
import functools

import jax
import jax.numpy as jnp
from jax.experimental import pallas as pl
from jax.experimental.pallas import tpu as pltpu


# ---------------------------------------------------------------------------
# Kernel
# ---------------------------------------------------------------------------
def _tower_kernel(num_mlps, *refs):
    """refs = (x_ref, w1, b1, ..., w_nm, b_nm, w_final, b_final, out_ref)."""
    x_ref = refs[0]
    o_ref = refs[-1]
    params = refs[1:-1]

    h = x_ref[...]  # bf16 activations [bt, d_in_pad]
    # Hidden stack: Linear -> ReLU, num_mlps times (f32 accumulation on MXU).
    for li in range(num_mlps):
        w = params[2 * li][...]        # bf16 [in_pad, out_pad]
        b = params[2 * li + 1][...]    # f32  [1, out_pad]
        acc = jnp.dot(h, w, preferred_element_type=jnp.float32) + b
        h = jnp.maximum(acc, 0.0).astype(jnp.bfloat16)
    # Final classifier Linear (no activation), f32 output.
    wf = params[-2][...]
    bf = params[-1][...]
    o_ref[...] = (
        jnp.dot(h, wf, preferred_element_type=jnp.float32) + bf
    ).astype(o_ref.dtype)


# ---------------------------------------------------------------------------
# Wrapper
# ---------------------------------------------------------------------------
def _round_up(n, m):
    return ((n + m - 1) // m) * m


def _pad2(a, rows, cols):
    return jnp.pad(a, ((0, rows - a.shape[0]), (0, cols - a.shape[1])))


def _choose_batch_tile(batch, max_tile, align=16):
    """Balanced, `align`-multiple batch tile that minimizes zero padding."""
    n_tiles = max(1, -(-batch // max_tile))          # cdiv(batch, max_tile)
    bt = -(-batch // n_tiles)                        # balanced per-tile rows
    return _round_up(max(bt, align), align)


def tower_graph_pallas(x, params, *, num_mlps, batch_tile=256, lane=128):
    """x: [B, 4*hidden] f32; params: flat list [w1, b1, ..., wf, bf] (f32).

    Returns f32 logits of shape [B, num_classes].
    """
    B, d_in = x.shape
    num_classes = params[-1].shape[-1]

    # Layer widths and their lane-dense (128-aligned) padded versions.
    dims = [d_in] + [params[2 * i].shape[1] for i in range(num_mlps)] + [num_classes]
    dims_p = [_round_up(d, lane) for d in dims]

    # Batch tiling: 16-aligned (bf16 sublane packing) and padding-minimizing.
    bt = _choose_batch_tile(B, batch_tile)
    B_pad = _round_up(B, bt)
    grid = (B_pad // bt,)

    # Pad + cast inputs/parameters. Padded rows/cols are zero so they never
    # contaminate real outputs (zero weight rows/cols contribute 0, ReLU(0)=0).
    x_p = _pad2(x.astype(jnp.float32), B_pad, dims_p[0]).astype(jnp.bfloat16)
    padded_params = []
    for li in range(num_mlps + 1):
        w = params[2 * li]
        b = params[2 * li + 1]
        w_p = _pad2(w, dims_p[li], dims_p[li + 1]).astype(jnp.bfloat16)
        b_p = _pad2(b, 1, dims_p[li + 1]).astype(jnp.float32)
        padded_params += [w_p, b_p]

    # Block specs: activations tiled over batch; params are full-array blocks
    # with a constant index_map (same block every step -> no re-DMA).
    x_spec = pl.BlockSpec((bt, dims_p[0]), lambda i: (i, 0))
    out_spec = pl.BlockSpec((bt, dims_p[-1]), lambda i: (i, 0))
    param_specs = [pl.BlockSpec(p.shape, lambda i: (0, 0)) for p in padded_params]

    out_p = pl.pallas_call(
        functools.partial(_tower_kernel, num_mlps),
        out_shape=jax.ShapeDtypeStruct((B_pad, dims_p[-1]), jnp.float32),
        grid_spec=pl.GridSpec(
            grid=grid,
            in_specs=[x_spec] + param_specs,
            out_specs=out_spec,
        ),
        compiler_params=pltpu.CompilerParams(
            dimension_semantics=("parallel",),
        ),
    )(x_p, *padded_params)

    # Strip batch and class padding.
    return out_p[:B, :num_classes]


# ---------------------------------------------------------------------------
# References
# ---------------------------------------------------------------------------
def tower_graph_reference_f32(x, params, *, num_mlps):
    h = x.astype(jnp.float32)
    for i in range(num_mlps):
        h = jnp.maximum(h @ params[2 * i] + params[2 * i + 1], 0.0)
    return h @ params[-2] + params[-1]


def tower_graph_reference_bf16(x, params, *, num_mlps):
    """Mirrors the kernel's precision: bf16 operands, f32 accumulation."""
    h = x.astype(jnp.bfloat16)
    for i in range(num_mlps):
        acc = jnp.dot(h, params[2 * i].astype(jnp.bfloat16),
                      preferred_element_type=jnp.float32) + params[2 * i + 1]
        h = jnp.maximum(acc, 0.0).astype(jnp.bfloat16)
    return jnp.dot(h, params[-2].astype(jnp.bfloat16),
                   preferred_element_type=jnp.float32) + params[-1]


def init_params(key, *, hidden_size, final_hidden_size, num_mlps, num_classes):
    """Deterministic synthetic parameters matching Tower_graph's shapes."""
    last_hidden = hidden_size * 4
    dims = [last_hidden] + [final_hidden_size] * num_mlps + [num_classes]
    params = []
    for i in range(len(dims) - 1):
        key, kw, kb = jax.random.split(key, 3)
        fan_in = dims[i]
        scale = 1.0 / jnp.sqrt(jnp.float32(fan_in))
        w = jax.random.uniform(kw, (dims[i], dims[i + 1]), jnp.float32, -scale, scale)
        b = jax.random.uniform(kb, (1, dims[i + 1]), jnp.float32, -scale, scale)
        params += [w, b]
    return params


if __name__ == "__main__":
    # Small, module-consistent config:
    hidden_size = 8          # -> last_hidden_size = 32
    final_hidden_size = 32
    num_mlps = 2
    num_classes = 4
    batch = 300              # deliberately not tile-aligned: exercises batch padding

    key = jax.random.PRNGKey(0)
    kx, kp = jax.random.split(key)
    x = jax.random.normal(kx, (batch, hidden_size * 4), dtype=jnp.float32)
    params = init_params(
        kp,
        hidden_size=hidden_size,
        final_hidden_size=final_hidden_size,
        num_mlps=num_mlps,
        num_classes=num_classes,
    )

    out = tower_graph_pallas(x, params, num_mlps=num_mlps, batch_tile=256)
    out = jax.block_until_ready(out)
    assert out.shape == (batch, num_classes)

    # Tight check vs a reference computed at the same precision as the kernel.
    ref_bf16 = tower_graph_reference_bf16(x, params, num_mlps=num_mlps)
    assert jnp.allclose(out, ref_bf16, atol=1e-3, rtol=1e-3), "mismatch vs bf16 reference"

    # Loose sanity check vs the full-f32 reference (bf16 weights => ~1% error).
    ref_f32 = tower_graph_reference_f32(x, params, num_mlps=num_mlps)
    assert jnp.allclose(out, ref_f32, atol=1e-1, rtol=1e-1), "mismatch vs f32 reference"

    print("KERNEL_OK")
</pallas_src>

<mosaic_0001>
module attributes {stable_mosaic.version = 11 : i64} {
  func.func @_tower_kernel(%arg0: i32, %arg1: memref<160x128xbf16, #tpu.memory_space<vmem>>, %arg2: memref<128x128xbf16, #tpu.memory_space<vmem>>, %arg3: memref<1x128xf32, #tpu.memory_space<vmem>>, %arg4: memref<128x128xbf16, #tpu.memory_space<vmem>>, %arg5: memref<1x128xf32, #tpu.memory_space<vmem>>, %arg6: memref<128x128xbf16, #tpu.memory_space<vmem>>, %arg7: memref<1x128xf32, #tpu.memory_space<vmem>>, %arg8: memref<160x128xf32, #tpu.memory_space<vmem>>) attributes {dimension_semantics = [#tpu.dimension_semantics<parallel>], iteration_bounds = array<i64: 2>, scalar_prefetch = 0 : i64, scratch_operands = 0 : i64, tpu.core_type = #tpu.core_type<tc>, window_params = [{transform_indices = @transform_0, window_bounds = array<i64: 160, 128>}, {pipeline_mode = #tpu.pipeline_mode<synchronous>, transform_indices = @transform_1, window_bounds = array<i64: 128, 128>}, {pipeline_mode = #tpu.pipeline_mode<synchronous>, transform_indices = @transform_2, window_bounds = array<i64: 1, 128>}, {pipeline_mode = #tpu.pipeline_mode<synchronous>, transform_indices = @transform_3, window_bounds = array<i64: 128, 128>}, {pipeline_mode = #tpu.pipeline_mode<synchronous>, transform_indices = @transform_4, window_bounds = array<i64: 1, 128>}, {pipeline_mode = #tpu.pipeline_mode<synchronous>, transform_indices = @transform_5, window_bounds = array<i64: 128, 128>}, {pipeline_mode = #tpu.pipeline_mode<synchronous>, transform_indices = @transform_6, window_bounds = array<i64: 1, 128>}, {transform_indices = @transform_7, window_bounds = array<i64: 160, 128>}]} {
    %c0 = arith.constant 0 : index
    %c0_0 = arith.constant 0 : index
    %0 = vector.load %arg1[%c0, %c0_0] : memref<160x128xbf16, #tpu.memory_space<vmem>>, vector<160x128xbf16>
    %c0_1 = arith.constant 0 : index
    %c0_2 = arith.constant 0 : index
    %1 = vector.load %arg2[%c0_1, %c0_2] : memref<128x128xbf16, #tpu.memory_space<vmem>>, vector<128x128xbf16>
    %c0_3 = arith.constant 0 : index
    %c0_4 = arith.constant 0 : index
    %2 = vector.load %arg3[%c0_3, %c0_4] : memref<1x128xf32, #tpu.memory_space<vmem>>, vector<1x128xf32>
    %cst = arith.constant dense<0.000000e+00> : vector<160x128xf32>
    %3 = tpu.matmul %0, %1, %cst {dimension_numbers = #tpu.dot_dimension_numbers<[1], [0], [0], [1], [0, 0, 1, 1], [], []>} : vector<160x128xbf16>, vector<128x128xbf16>, vector<160x128xf32> -> vector<160x128xf32>
    %4 = vector.broadcast %2 : vector<1x128xf32> to vector<160x128xf32>
    %5 = arith.addf %3, %4 : vector<160x128xf32>
    %cst_5 = arith.constant 0.000000e+00 : f32
    %6 = vector.broadcast %cst_5 : f32 to vector<160x128xf32>
    %7 = arith.maximumf %5, %6 : vector<160x128xf32>
    %8 = arith.truncf %7 : vector<160x128xf32> to vector<160x128xbf16>
    %c0_6 = arith.constant 0 : index
    %c0_7 = arith.constant 0 : index
    %9 = vector.load %arg4[%c0_6, %c0_7] : memref<128x128xbf16, #tpu.memory_space<vmem>>, vector<128x128xbf16>
    %c0_8 = arith.constant 0 : index
    %c0_9 = arith.constant 0 : index
    %10 = vector.load %arg5[%c0_8, %c0_9] : memref<1x128xf32, #tpu.memory_space<vmem>>, vector<1x128xf32>
    %cst_10 = arith.constant dense<0.000000e+00> : vector<160x128xf32>
    %11 = tpu.matmul %8, %9, %cst_10 {dimension_numbers = #tpu.dot_dimension_numbers<[1], [0], [0], [1], [0, 0, 1, 1], [], []>} : vector<160x128xbf16>, vector<128x128xbf16>, vector<160x128xf32> -> vector<160x128xf32>
    %12 = vector.broadcast %10 : vector<1x128xf32> to vector<160x128xf32>
    %13 = arith.addf %11, %12 : vector<160x128xf32>
    %cst_11 = arith.constant 0.000000e+00 : f32
    %14 = vector.broadcast %cst_11 : f32 to vector<160x128xf32>
    %15 = arith.maximumf %13, %14 : vector<160x128xf32>
    %16 = arith.truncf %15 : vector<160x128xf32> to vector<160x128xbf16>
    %c0_12 = arith.constant 0 : index
    %c0_13 = arith.constant 0 : index
    %17 = vector.load %arg6[%c0_12, %c0_13] : memref<128x128xbf16, #tpu.memory_space<vmem>>, vector<128x128xbf16>
    %c0_14 = arith.constant 0 : index
    %c0_15 = arith.constant 0 : index
    %18 = vector.load %arg7[%c0_14, %c0_15] : memref<1x128xf32, #tpu.memory_space<vmem>>, vector<1x128xf32>
    %cst_16 = arith.constant dense<0.000000e+00> : vector<160x128xf32>
    %19 = tpu.matmul %16, %17, %cst_16 {dimension_numbers = #tpu.dot_dimension_numbers<[1], [0], [0], [1], [0, 0, 1, 1], [], []>} : vector<160x128xbf16>, vector<128x128xbf16>, vector<160x128xf32> -> vector<160x128xf32>
    %20 = vector.broadcast %18 : vector<1x128xf32> to vector<160x128xf32>
    %21 = arith.addf %19, %20 : vector<160x128xf32>
    %c0_17 = arith.constant 0 : index
    %c0_18 = arith.constant 0 : index
    %22 = vector.load %arg8[%c0_17, %c0_18] : memref<160x128xf32, #tpu.memory_space<vmem>>, vector<160x128xf32>
    tpu.vector_store %arg8[%c0_17, %c0_18], %21 {strides = array<i32>} : memref<160x128xf32, #tpu.memory_space<vmem>>, vector<160x128xf32>,
    return
  }
  func.func @transform_0(%arg0: i32) -> (i32, i32) {
    %c0_i32 = arith.constant 0 : i32
    %c0_i32_0 = arith.constant 0 : i32
    return %arg0, %c0_i32 : i32, i32
  }
  func.func @transform_1(%arg0: i32) -> (i32, i32) {
    %c0_i32 = arith.constant 0 : i32
    %c0_i32_0 = arith.constant 0 : i32
    %c0_i32_1 = arith.constant 0 : i32
    return %c0_i32, %c0_i32_0 : i32, i32
  }
  func.func @transform_2(%arg0: i32) -> (i32, i32) {
    %c0_i32 = arith.constant 0 : i32
    %c0_i32_0 = arith.constant 0 : i32
    %c0_i32_1 = arith.constant 0 : i32
    return %c0_i32, %c0_i32_0 : i32, i32
  }
  func.func @transform_3(%arg0: i32) -> (i32, i32) {
    %c0_i32 = arith.constant 0 : i32
    %c0_i32_0 = arith.constant 0 : i32
    %c0_i32_1 = arith.constant 0 : i32
    return %c0_i32, %c0_i32_0 : i32, i32
  }
  func.func @transform_4(%arg0: i32) -> (i32, i32) {
    %c0_i32 = arith.constant 0 : i32
    %c0_i32_0 = arith.constant 0 : i32
    %c0_i32_1 = arith.constant 0 : i32
    return %c0_i32, %c0_i32_0 : i32, i32
  }
  func.func @transform_5(%arg0: i32) -> (i32, i32) {
    %c0_i32 = arith.constant 0 : i32
    %c0_i32_0 = arith.constant 0 : i32
    %c0_i32_1 = arith.constant 0 : i32
    return %c0_i32, %c0_i32_0 : i32, i32
  }
  func.func @transform_6(%arg0: i32) -> (i32, i32) {
    %c0_i32 = arith.constant 0 : i32
    %c0_i32_0 = arith.constant 0 : i32
    %c0_i32_1 = arith.constant 0 : i32
    return %c0_i32, %c0_i32_0 : i32, i32
  }
  func.func @transform_7(%arg0: i32) -> (i32, i32) {
    %c0_i32 = arith.constant 0 : i32
    %c0_i32_0 = arith.constant 0 : i32
    return %arg0, %c0_i32 : i32, i32
  }
}

</mosaic_0001>

<llo_original>
// kernel: tpu_custom_call.1
$region0: #{tpu_custom_call.1}
  #allocation0 [shape = 'u32[]', space=smem, size = 0x4, offset = 0x4, fixed_abs, tag = 'smem constant byte address 0x4 - core index']
  #allocation1 [shape = 'u32[144,128]{1,0:T(1,128)}', space=vmem, size = 0x12000, scoped, tag = 'internal scratch']
  %s0 = inlined_call_operand.hbm [shape: bf16[320,128], index: 0, kind: input, shape index: {}]
  %s1 = inlined_call_operand.hbm [shape: bf16[128,128], index: 1, kind: input, shape index: {}]
  %s2 = inlined_call_operand.vmem [shape: f32[1,128], index: 2, kind: input, shape index: {}]
  %s3 = inlined_call_operand.hbm [shape: bf16[128,128], index: 3, kind: input, shape index: {}]
  %s4 = inlined_call_operand.vmem [shape: f32[1,128], index: 4, kind: input, shape index: {}]
  %s5 = inlined_call_operand.hbm [shape: bf16[128,128], index: 5, kind: input, shape index: {}]
  %s6 = inlined_call_operand.vmem [shape: f32[1,128], index: 6, kind: input, shape index: {}]
  %s7 = inlined_call_operand.hbm [shape: f32[320,128], index: 7, kind: output, shape index: {}]
  %s8 = sld [smem:[#allocation0]]
  $region77: #{tpu_custom_call.1} parent=0
    _
  %s10 = ssub.s32 1, %s8
  %s11 = scalar_select 0, %s10, %s8
  $region1: #{tpu_custom_call.1} parent=0
    #allocation2 [shape = 'u8[81920]{0}', space=vmem, size = 0x14000, scoped, tag = 'input window, operand 0']
    #allocation3 [shape = 's32[2]{0}', space=sflag, size = 0x8, scoped, tag = 'scoped memory for tpu_custom_call.1']
    #allocation4 [shape = 's32[2]{0}', space=sflag, size = 0x8, scoped, tag = 'scoped memory for tpu_custom_call.1']
    #allocation5 [shape = 'u8[32768]{0}', space=vmem, size = 0x8000, scoped, tag = 'input window, operand 1, single buffered']
    #allocation6 [shape = 's32[1]{0}', space=sflag, size = 0x4, scoped, tag = 'scoped memory for tpu_custom_call.1']
    #allocation7 [shape = 'u8[32768]{0}', space=vmem, size = 0x8000, scoped, tag = 'input window, operand 3, single buffered']
    #allocation8 [shape = 'u8[32768]{0}', space=vmem, size = 0x8000, scoped, tag = 'input window, operand 5, single buffered']
    #allocation9 [shape = 's32[1]{0}', space=sflag, size = 0x4, scoped, tag = 'scoped memory for tpu_custom_call.1']
    #allocation10 [shape = 'u8[163840]{0}', space=vmem, size = 0x28000, scoped, tag = 'output window, operand 0']
    %12 = vsyncpa [#allocation3], 0
    %s13 = scalar_lea.sflag [#allocation3], 1
    %14 = vsyncpa %s13, 0
    %15 = vsyncpa [#allocation6], 0
    %16 = vsyncpa [#allocation9], 0
    %17 = vsyncpa [#allocation4], 0
    %s18 = scalar_lea.sflag [#allocation4], 1
    %19 = vsyncpa %s18, 0
    loop: start=0, step=1, limit=4
    $region2: #{tpu_custom_call.1} parent=1 // loop_pre_header
      _
    $region3: #{tpu_custom_call.1} parent=1 // loop_header
      %s21 = sphi 0, %s25
      %p22 = scmp.ge.s32.totalorder %s21, 4
      %s31 = sphi 0, %s33
      %s34 = sphi 0, %s31
      %s35 = sphi 0, %s34
      %s51 = sphi 0, %s35
      %s55 = sphi 0, %s55
      %s57 = sphi 0, %s55
      %s58 = sphi 0, %s57
      %s72 = sphi 0, %s58
      %s76 = sphi 0, %s76
      %s78 = sphi 0, %s76
      %s79 = sphi 0, %s78
      %s93 = sphi 0, %s79
      %s97 = sphi 0, %s97
      %s99 = sphi 0, %s97
      %s100 = sphi 0, %s99
      %s114 = sphi 0, %s100
      %s118 = sphi 0, %s118
      %s120 = sphi 0, %s118
      %s121 = sphi 0, %s120
      %s135 = sphi 0, %s121
      %s139 = sphi 0, %s139
      %s141 = sphi 0, %s139
      %s142 = sphi 0, %s141
      %s156 = sphi 0, %s142
      %s160 = sphi 0, %s160
      %s162 = sphi 0, %s160
      %s163 = sphi 0, %s162
      %s177 = sphi 0, %s163
      %s183 = sphi 0, %s185
      %s186 = sphi 0, %s183
      %s187 = sphi 0, %s186
      %s203 = sphi 0, %s187
    $region4: #{tpu_custom_call.1} parent=1 // loop_header_branch
      %24 = sbr.rel (%p22) target = $region8
    $region5: #{tpu_custom_call.1} parent=1 // loop_body
      %s26 = ssub.s32 %s21, 1
      %s27 = ssub.s32 %s21, 2
      %s28 = sadd.s32 %s21, 1
      %s29 = ssub.s32 %s21, %s28
      %p30 = scmp.eq.s32.totalorder %s29, 0
      %s32 = sadd.s32 %s31, 1
      %s33 = scalar_select %p30, %s31, %s32
      %p36 = pneg %p30
      %p37 = scmp.eq.s32.totalorder %s21, 1
      %p38 = por %p36, %p37
      %p39 = scmp.ne.s32.totalorder %s31, %s34
      %p40 = scmp.eq.s32.totalorder %s21, 0
      %p41 = por %p39, %p40
      %p42 = scmp.ne.s32.totalorder %s31, %s34
      %p43 = scmp.eq.s32.totalorder %s26, 1
      %p44 = por %p42, %p43
      %p45 = scmp.ne.s32.totalorder %s34, %s35
      %p46 = scmp.eq.s32.totalorder %s26, 0
      %p47 = por %p45, %p46
      %p48 = scmp.ne.s32.totalorder %s34, %s35
      %p49 = scmp.eq.s32.totalorder %s27, 1
      %p50 = por %p48, %p49
      %p52 = scmp.ne.s32.totalorder %s35, %s51
      %p53 = scmp.eq.s32.totalorder %s27, 0
      %p54 = por %p52, %p53
      %s56 = sadd.s32 %s55, 1
      %p59 = scmp.eq.s32.totalorder %s21, 1
      %p60 = scmp.ne.s32.totalorder %s55, %s57
      %p61 = scmp.eq.s32.totalorder %s21, 0
      %p62 = por %p60, %p61
      %p63 = scmp.ne.s32.totalorder %s55, %s57
      %p64 = scmp.eq.s32.totalorder %s26, 1
      %p65 = por %p63, %p64
      %p66 = scmp.ne.s32.totalorder %s57, %s58
      %p67 = scmp.eq.s32.totalorder %s26, 0
      %p68 = por %p66, %p67
      %p69 = scmp.ne.s32.totalorder %s57, %s58
      %p70 = scmp.eq.s32.totalorder %s27, 1
      %p71 = por %p69, %p70
      %p73 = scmp.ne.s32.totalorder %s58, %s72
      %p74 = scmp.eq.s32.totalorder %s27, 0
      %p75 = por %p73, %p74
      %s77 = sadd.s32 %s76, 1
      %p80 = scmp.eq.s32.totalorder %s21, 1
      %p81 = scmp.ne.s32.totalorder %s76, %s78
      %p82 = scmp.eq.s32.totalorder %s21, 0
      %p83 = por %p81, %p82
      %p84 = scmp.ne.s32.totalorder %s76, %s78
      %p85 = scmp.eq.s32.totalorder %s26, 1
      %p86 = por %p84, %p85
      %p87 = scmp.ne.s32.totalorder %s78, %s79
      %p88 = scmp.eq.s32.totalorder %s26, 0
      %p89 = por %p87, %p88
      %p90 = scmp.ne.s32.totalorder %s78, %s79
      %p91 = scmp.eq.s32.totalorder %s27, 1
      %p92 = por %p90, %p91
      %p94 = scmp.ne.s32.totalorder %s79, %s93
      %p95 = scmp.eq.s32.totalorder %s27, 0
      %p96 = por %p94, %p95
      %s98 = sadd.s32 %s97, 1
      %p101 = scmp.eq.s32.totalorder %s21, 1
      %p102 = scmp.ne.s32.totalorder %s97, %s99
      %p103 = scmp.eq.s32.totalorder %s21, 0
      %p104 = por %p102, %p103
      %p105 = scmp.ne.s32.totalorder %s97, %s99
      %p106 = scmp.eq.s32.totalorder %s26, 1
      %p107 = por %p105, %p106
      %p108 = scmp.ne.s32.totalorder %s99, %s100
      %p109 = scmp.eq.s32.totalorder %s26, 0
      %p110 = por %p108, %p109
      %p111 = scmp.ne.s32.totalorder %s99, %s100
      %p112 = scmp.eq.s32.totalorder %s27, 1
      %p113 = por %p111, %p112
      %p115 = scmp.ne.s32.totalorder %s100, %s114
      %p116 = scmp.eq.s32.totalorder %s27, 0
      %p117 = por %p115, %p116
      %s119 = sadd.s32 %s118, 1
      %p122 = scmp.eq.s32.totalorder %s21, 1
      %p123 = scmp.ne.s32.totalorder %s118, %s120
      %p124 = scmp.eq.s32.totalorder %s21, 0
      %p125 = por %p123, %p124
      %p126 = scmp.ne.s32.totalorder %s118, %s120
      %p127 = scmp.eq.s32.totalorder %s26, 1
      %p128 = por %p126, %p127
      %p129 = scmp.ne.s32.totalorder %s120, %s121
      %p130 = scmp.eq.s32.totalorder %s26, 0
      %p131 = por %p129, %p130
      %p132 = scmp.ne.s32.totalorder %s120, %s121
      %p133 = scmp.eq.s32.totalorder %s27, 1
      %p134 = por %p132, %p133
      %p136 = scmp.ne.s32.totalorder %s121, %s135
      %p137 = scmp.eq.s32.totalorder %s27, 0
      %p138 = por %p136, %p137
      %s140 = sadd.s32 %s139, 1
      %p143 = scmp.eq.s32.totalorder %s21, 1
      %p144 = scmp.ne.s32.totalorder %s139, %s141
      %p145 = scmp.eq.s32.totalorder %s21, 0
      %p146 = por %p144, %p145
      %p147 = scmp.ne.s32.totalorder %s139, %s141
      %p148 = scmp.eq.s32.totalorder %s26, 1
      %p149 = por %p147, %p148
      %p150 = scmp.ne.s32.totalorder %s141, %s142
      %p151 = scmp.eq.s32.totalorder %s26, 0
      %p152 = por %p150, %p151
      %p153 = scmp.ne.s32.totalorder %s141, %s142
      %p154 = scmp.eq.s32.totalorder %s27, 1
      %p155 = por %p153, %p154
      %p157 = scmp.ne.s32.totalorder %s142, %s156
      %p158 = scmp.eq.s32.totalorder %s27, 0
      %p159 = por %p157, %p158
      %s161 = sadd.s32 %s160, 1
      %p164 = scmp.eq.s32.totalorder %s21, 1
      %p165 = scmp.ne.s32.totalorder %s160, %s162
      %p166 = scmp.eq.s32.totalorder %s21, 0
      %p167 = por %p165, %p166
      %p168 = scmp.ne.s32.totalorder %s160, %s162
      %p169 = scmp.eq.s32.totalorder %s26, 1
      %p170 = por %p168, %p169
      %p171 = scmp.ne.s32.totalorder %s162, %s163
      %p172 = scmp.eq.s32.totalorder %s26, 0
      %p173 = por %p171, %p172
      %p174 = scmp.ne.s32.totalorder %s162, %s163
      %p175 = scmp.eq.s32.totalorder %s27, 1
      %p176 = por %p174, %p175
      %p178 = scmp.ne.s32.totalorder %s163, %s177
      %p179 = scmp.eq.s32.totalorder %s27, 0
      %p180 = por %p178, %p179
      %s181 = ssub.s32 %s21, %s28
      %p182 = scmp.eq.s32.totalorder %s181, 0
      %s184 = sadd.s32 %s183, 1
      %s185 = scalar_select %p182, %s183, %s184
      %p188 = pneg %p182
      %p189 = scmp.eq.s32.totalorder %s21, 1
      %p190 = por %p188, %p189
      %p191 = scmp.ne.s32.totalorder %s183, %s186
      %p192 = scmp.eq.s32.totalorder %s21, 0
      %p193 = por %p191, %p192
      %p194 = scmp.ne.s32.totalorder %s183, %s186
      %p195 = scmp.eq.s32.totalorder %s26, 1
      %p196 = por %p194, %p195
      %p197 = scmp.ne.s32.totalorder %s186, %s187
      %p198 = scmp.eq.s32.totalorder %s26, 0
      %p199 = por %p197, %p198
      %p200 = scmp.ne.s32.totalorder %s186, %s187
      %p201 = scmp.eq.s32.totalorder %s27, 1
      %p202 = por %p200, %p201
      %p204 = scmp.ne.s32.totalorder %s187, %s203
      %p205 = scmp.eq.s32.totalorder %s27, 0
      %p206 = por %p204, %p205
      %p207 = scmp.le.s32.totalorder 1, %s21
      %p208 = scmp.lt.s32.totalorder %s21, 3
      %p209 = pnand %p207, %p208
      %p210 = pneg %p209
      // Predicated region
      $region9: #{tpu_custom_call.1} parent=5 // pred_check
        _
      $region10: #{tpu_custom_call.1} parent=5 // pred_check_branch
        %212 = sbr.rel (%p209) target = $region12
      $region11: #{tpu_custom_call.1} parent=5 // pred_region
        %s213 = ssub.s32 %s21, 1
        // Predicated region
        $region13: #{tpu_custom_call.1} parent=11 // pred_check
          %p214 = pneg %p68
        $region14: #{tpu_custom_call.1} parent=11 // pred_check_branch
          %216 = sbr.rel (%p214) target = $region16
        $region15: #{tpu_custom_call.1} parent=11 // pred_region
          %s218 = ssub.s32 1024, 1024
          %219 = vsyncadd [#allocation6], %s218
          %s220 = sshll.u32 [#allocation5], 4
          %s221 = int_to_ptr.vmem [resolvable:$true] %s220
          %226 = dma.hbm_to_vmem [thread:$0]  %s1, 1024, %s221, [#allocation6], 64, 64, 4
        $region16: #{tpu_custom_call.1} parent=11 // pred_fallthru
          _
        // Predicated region
        $region17: #{tpu_custom_call.1} parent=11 // pred_check
          %p227 = pneg %p89
        $region18: #{tpu_custom_call.1} parent=11 // pred_check_branch
          %229 = sbr.rel (%p227) target = $region20
        $region19: #{tpu_custom_call.1} parent=11 // pred_region
          _
        $region20: #{tpu_custom_call.1} parent=11 // pred_fallthru
          _
        // Predicated region
        $region21: #{tpu_custom_call.1} parent=11 // pred_check
          %p230 = pneg %p110
        $region22: #{tpu_custom_call.1} parent=11 // pred_check_branch
          %232 = sbr.rel (%p230) target = $region24
        $region23: #{tpu_custom_call.1} parent=11 // pred_region
          %s234 = ssub.s32 1024, 1024
          %235 = vsyncadd [#allocation6], %s234
          %s236 = sshll.u32 [#allocation7], 4
          %s237 = int_to_ptr.vmem [resolvable:$true] %s236
          %242 = dma.hbm_to_vmem [thread:$0]  %s3, 1024, %s237, [#allocation6], 64, 64, 4
        $region24: #{tpu_custom_call.1} parent=11 // pred_fallthru
          _
        // Predicated region
        $region25: #{tpu_custom_call.1} parent=11 // pred_check
          %p243 = pneg %p131
        $region26: #{tpu_custom_call.1} parent=11 // pred_check_branch
          %245 = sbr.rel (%p243) target = $region28
        $region27: #{tpu_custom_call.1} parent=11 // pred_region
          _
        $region28: #{tpu_custom_call.1} parent=11 // pred_fallthru
          _
        // Predicated region
        $region29: #{tpu_custom_call.1} parent=11 // pred_check
          %p246 = pneg %p152
        $region30: #{tpu_custom_call.1} parent=11 // pred_check_branch
          %248 = sbr.rel (%p246) target = $region32
        $region31: #{tpu_custom_call.1} parent=11 // pred_region
          %s250 = ssub.s32 1024, 1024
          %251 = vsyncadd [#allocation9], %s250
          %s252 = sshll.u32 [#allocation8], 4
          %s253 = int_to_ptr.vmem [resolvable:$true] %s252
          %258 = dma.hbm_to_vmem [thread:$0]  %s5, 1024, %s253, [#allocation9], 64, 64, 4
        $region32: #{tpu_custom_call.1} parent=11 // pred_fallthru
          _
        // Predicated region
        $region33: #{tpu_custom_call.1} parent=11 // pred_check
          %p259 = pneg %p173
        $region34: #{tpu_custom_call.1} parent=11 // pred_check_branch
          %261 = sbr.rel (%p259) target = $region36
        $region35: #{tpu_custom_call.1} parent=11 // pred_region
          _
        $region36: #{tpu_custom_call.1} parent=11 // pred_fallthru
          _
      $region12: #{tpu_custom_call.1} parent=5 // pred_fallthru
        _
      %p262 = scmp.lt.s32.totalorder %s21, 2
      // Predicated region
      $region37: #{tpu_custom_call.1} parent=5 // pred_check
        %p263 = pneg %p262
      $region38: #{tpu_custom_call.1} parent=5 // pred_check_branch
        %265 = sbr.rel (%p263) target = $region40
      $region39: #{tpu_custom_call.1} parent=5 // pred_region
        // Predicated region
        $region41: #{tpu_custom_call.1} parent=39 // pred_check
          %p266 = pneg %p41
        $region42: #{tpu_custom_call.1} parent=39 // pred_check_branch
          %268 = sbr.rel (%p266) target = $region44
        $region43: #{tpu_custom_call.1} parent=39 // pred_region
          %s269 = sand.u32 %s31, 1
          %s270 = scalar_lea.sflag [#allocation3], %s269
          %s271 = sand.u32 %s31, 1
          %s272 = smul.addr %s271, 80
          %s273 = scalar_lea.vmem [#allocation2], %s272
          %s274 = smul.u32 20, %s21
          %s276 = ssub.s32 1280, 1280
          %277 = vsyncadd %s270, %s276
          %s278 = smul.addr %s274, 64
          %s279 = scalar_lea.hbm %s0, %s278
          %s280 = sshll.u32 %s273, 4
          %s281 = int_to_ptr.vmem [resolvable:$true] %s280
          %286 = dma.hbm_to_vmem [thread:$0]  %s279, 1280, %s281, %s270, 64, 64, 4
        $region44: #{tpu_custom_call.1} parent=39 // pred_fallthru
          _
      $region40: #{tpu_custom_call.1} parent=5 // pred_fallthru
        _
      %p287 = scmp.le.s32.totalorder 1, %s21
      %p288 = scmp.lt.s32.totalorder %s21, 3
      %p289 = pnand %p287, %p288
      %p290 = pneg %p289
      // Predicated region
      $region45: #{tpu_custom_call.1} parent=5 // pred_check
        _
      $region46: #{tpu_custom_call.1} parent=5 // pred_check_branch
        %292 = sbr.rel (%p289) target = $region48
      $region47: #{tpu_custom_call.1} parent=5 // pred_region
        %s293 = ssub.s32 %s21, 1
        %s294 = sand.u32 %s34, 1
        %s295 = scalar_lea.sflag [#allocation3], %s294
        %s296 = sand.u32 %s34, 1
        %s297 = smul.addr %s296, 80
        %s298 = scalar_lea.vmem [#allocation2], %s297
        // Predicated region
        $region49: #{tpu_custom_call.1} parent=47 // pred_check
          %p299 = pneg %p47
        $region50: #{tpu_custom_call.1} parent=47 // pred_check_branch
          %301 = sbr.rel (%p299) target = $region52
        $region51: #{tpu_custom_call.1} parent=47 // pred_region
          %302 = dma.done %s295, 1280
        $region52: #{tpu_custom_call.1} parent=47 // pred_fallthru
          _
        // Predicated region
        $region53: #{tpu_custom_call.1} parent=47 // pred_check
          %p303 = pneg %p68
        $region54: #{tpu_custom_call.1} parent=47 // pred_check_branch
          %305 = sbr.rel (%p303) target = $region56
        $region55: #{tpu_custom_call.1} parent=47 // pred_region
          %306 = dma.done [#allocation6], 1024
        $region56: #{tpu_custom_call.1} parent=47 // pred_fallthru
          _
        // Predicated region
        $region57: #{tpu_custom_call.1} parent=47 // pred_check
          %p307 = pneg %p110
        $region58: #{tpu_custom_call.1} parent=47 // pred_check_branch
          %309 = sbr.rel (%p307) target = $region60
        $region59: #{tpu_custom_call.1} parent=47 // pred_region
          %310 = dma.done [#allocation6], 1024
        $region60: #{tpu_custom_call.1} parent=47 // pred_fallthru
          _
        // Predicated region
        $region61: #{tpu_custom_call.1} parent=47 // pred_check
          %p311 = pneg %p152
        $region62: #{tpu_custom_call.1} parent=47 // pred_check_branch
          %313 = sbr.rel (%p311) target = $region64
        $region63: #{tpu_custom_call.1} parent=47 // pred_region
          %314 = dma.done [#allocation9], 1024
        $region64: #{tpu_custom_call.1} parent=47 // pred_fallthru
          _
        %s315 = sand.u32 %s34, 1
        %s316 = scalar_lea.sflag [#allocation3], %s315
        %s317 = sand.u32 %s34, 1
        %s318 = smul.addr %s317, 80
        %s319 = scalar_lea.vmem [#allocation2], %s318
        %p320 = pneg %p47
        %p321 = pneg %p44
        %p322 = pneg %p68
        %p323 = pneg %p65
        %p324 = pneg %p89
        %p325 = pneg %p86
        %p326 = pneg %p110
        %p327 = pneg %p107
        %p328 = pneg %p131
        %p329 = pneg %p128
        %p330 = pneg %p152
        %p331 = pneg %p149
        %p332 = pneg %p173
        %p333 = pneg %p170
        %p334 = pneg %p199
        %p335 = pneg %p196
        %s336 = sand.u32 %s186, 1
        %s337 = scalar_lea.sflag [#allocation4], %s336
        %s338 = sand.u32 %s186, 1
        %s339 = smul.addr %s338, 160
        %s340 = scalar_lea.vmem [#allocation10], %s339
        %s341 = smul.u32 20, %s26
        %s342 = smul.u32 20, %s26
        %v344 = vld [vmem:[%s298] sm:$0xf]
        %v345 = vld [vmem:[%s298 + $0x4] sm:$0xf]
        %v346 = vld [vmem:[%s298 + $0x8] sm:$0xf]
        %v347 = vld [vmem:[%s298 + $0xc] sm:$0xf]
        %v348 = vld [vmem:[%s298 + $0x10] sm:$0xf]
        %v349 = vld [vmem:[%s298 + $0x14] sm:$0xf]
        %v350 = vld [vmem:[%s298 + $0x18] sm:$0xf]
        %v351 = vld [vmem:[%s298 + $0x1c] sm:$0xf]
        %v352 = vld [vmem:[%s298 + $0x20] sm:$0xf]
        %v353 = vld [vmem:[%s298 + $0x24] sm:$0xf]
        %v354 = vld [vmem:[%s298 + $0x28] sm:$0xf]
        %v355 = vld [vmem:[%s298 + $0x2c] sm:$0xf]
        %v356 = vld [vmem:[%s298 + $0x30] sm:$0xf]
        %v357 = vld [vmem:[%s298 + $0x34] sm:$0xf]
        %v358 = vld [vmem:[%s298 + $0x38] sm:$0xf]
        %v359 = vld [vmem:[%s298 + $0x3c] sm:$0xf]
        %v360 = vld [vmem:[%s298 + $0x40] sm:$0xf]
        %v361 = vld [vmem:[%s298 + $0x44] sm:$0xf]
        %v362 = vld [vmem:[%s298 + $0x48] sm:$0xf]
        %v363 = vld [vmem:[%s298 + $0x4c] sm:$0xf]
        %v364 = vld [vmem:[#allocation5] sm:$0xf]
        %v365 = vld [vmem:[#allocation5 + $0x4] sm:$0xf]
        %v366 = vld [vmem:[#allocation5 + $0x8] sm:$0xf]
        %v367 = vld [vmem:[#allocation5 + $0xc] sm:$0xf]
        %v368 = vld [vmem:[#allocation5 + $0x10] sm:$0xf]
        %v369 = vld [vmem:[#allocation5 + $0x14] sm:$0xf]
        %v370 = vld [vmem:[#allocation5 + $0x18] sm:$0xf]
        %v371 = vld [vmem:[#allocation5 + $0x1c] sm:$0xf]
        %v372 = vld [vmem:[#allocation5 + $0x20] sm:$0xf]
        %v373 = vld [vmem:[#allocation5 + $0x24] sm:$0xf]
        %v374 = vld [vmem:[#allocation5 + $0x28] sm:$0xf]
        %v375 = vld [vmem:[#allocation5 + $0x2c] sm:$0xf]
        %v376 = vld [vmem:[#allocation5 + $0x30] sm:$0xf]
        %v377 = vld [vmem:[#allocation5 + $0x34] sm:$0xf]
        %v378 = vld [vmem:[#allocation5 + $0x38] sm:$0xf]
        %v379 = vld [vmem:[#allocation5 + $0x3c] sm:$0xf]
        %v380 = vld [vmem:[%s2] sm:$0x1]
        %v382 = vlaneseq
        %v383 = vshrl.u32 %v382, 7
        %v384 = vsub.s32 0, %v383
        %v385 = vrot.slane %v380, %v384
        %v407 = vunpack.c.l.b16 %v344
        %v408 = vunpack.c.l.b16 %v345
        %v409 = vunpack.c.l.b16 %v346
        %v410 = vunpack.c.l.b16 %v347
        %v411 = vunpack.c.l.b16 %v348
        %v412 = vunpack.c.l.b16 %v349
        %v413 = vunpack.c.l.b16 %v350
        %v414 = vunpack.c.l.b16 %v351
        %v415 = vunpack.c.l.b16 %v352
        %v416 = vunpack.c.l.b16 %v353
        %v417 = vunpack.c.l.b16 %v354
        %v418 = vunpack.c.l.b16 %v355
        %v419 = vunpack.c.l.b16 %v356
        %v420 = vunpack.c.l.b16 %v357
        %v421 = vunpack.c.l.b16 %v358
        %v422 = vunpack.c.l.b16 %v359
        %v423 = vunpack.c.l.b16 %v360
        %v424 = vunpack.c.l.b16 %v361
        %v425 = vunpack.c.l.b16 %v362
        %v426 = vunpack.c.l.b16 %v363
        %v427 = vpack.c.b16 %v408, %v407
        %v428 = vpack.c.b16 %v410, %v409
        %v429 = vpack.c.b16 %v412, %v411
        %v430 = vpack.c.b16 %v414, %v413
        %v431 = vpack.c.b16 %v416, %v415
        %v432 = vpack.c.b16 %v418, %v417
        %v433 = vpack.c.b16 %v420, %v419
        %v434 = vpack.c.b16 %v422, %v421
        %v435 = vpack.c.b16 %v424, %v423
        %v436 = vpack.c.b16 %v426, %v425
        %v463 = vunpack.c.l.b16 %v364
        %v464 = vunpack.c.l.b16 %v365
        %v465 = vunpack.c.l.b16 %v366
        %v466 = vunpack.c.l.b16 %v367
        %v467 = vunpack.c.l.b16 %v368
        %v468 = vunpack.c.l.b16 %v369
        %v469 = vunpack.c.l.b16 %v370
        %v470 = vunpack.c.l.b16 %v371
        %v471 = vunpack.c.l.b16 %v372
        %v472 = vunpack.c.l.b16 %v373
        %v473 = vunpack.c.l.b16 %v374
        %v474 = vunpack.c.l.b16 %v375
        %v475 = vunpack.c.l.b16 %v376
        %v476 = vunpack.c.l.b16 %v377
        %v477 = vunpack.c.l.b16 %v378
        %v478 = vunpack.c.l.b16 %v379
        %v479 = vpack.c.b16 %v464, %v463
        %v480 = vpack.c.b16 %v466, %v465
        %v481 = vpack.c.b16 %v468, %v467
        %v482 = vpack.c.b16 %v470, %v469
        %v483 = vpack.c.b16 %v472, %v471
        %v484 = vpack.c.b16 %v474, %v473
        %v485 = vpack.c.b16 %v476, %v475
        %v486 = vpack.c.b16 %v478, %v477
        %495 = vmatprep.subr.bf16.mxu0 0
        %496 = vmatpush1.bf16.msra.mxu0 %v486
        %497 = vmatprep.subr.bf16.mxu0 0
        %498 = vmatpush1.bf16.msra.mxu0 %v485
        %499 = vmatprep.subr.bf16.mxu0 0
        %500 = vmatpush1.bf16.msra.mxu0 %v484
        %501 = vmatprep.subr.bf16.mxu0 0
        %502 = vmatpush1.bf16.msra.mxu0 %v483
        %503 = vmatprep.subr.bf16.mxu0 0
        %504 = vmatpush1.bf16.msra.mxu0 %v482
        %505 = vmatprep.subr.bf16.mxu0 0
        %506 = vmatpush1.bf16.msra.mxu0 %v481
        %507 = vmatprep.subr.bf16.mxu0 0
        %508 = vmatpush1.bf16.msra.mxu0 %v480
        %509 = vmatprep.subr.bf16.mxu0 0
        %510 = vmatpush1.bf16.msra.mxu0 %v479
        %511 = vmatprep.subr.bf16.mxu0 0
        %512 = vmatpush2.bf16.msra.mxu0 0
        %513 = vmatprep.subr.bf16.mxu0 0
        %514 = vmatpush2.bf16.msra.mxu0 0
        %515 = vmatprep.subr.bf16.mxu0 0
        %516 = vmatpush2.bf16.msra.mxu0 0
        %517 = vmatprep.subr.bf16.mxu0 0
        %518 = vmatpush2.bf16.msra.mxu0 0
        %519 = vmatprep.subr.bf16.mxu0 0
        %520 = vmatpush2.bf16.msra.mxu0 0
        %521 = vmatprep.subr.bf16.mxu0 0
        %522 = vmatpush2.bf16.msra.mxu0 0
        %523 = vmatprep.subr.bf16.mxu0 0
        %524 = vmatpush2.bf16.msra.mxu0 0
        %525 = vmatprep.subr.bf16.mxu0 0
        %526 = vmatpush2.bf16.msra.mxu0 0
        %527 = vmatprep.mubr.bf16.mxu0 0
        %528 = vmatmul.mubr.bf16.gmra.mxu0 %v427
        %v529 = vpop.f32.mrf.mxu0
        %v530 = vadd.f32 %v385, %v529
        %v531 = vpop.f32.mrf.mxu0
        %v532 = vpop.f32.mrf.mxu0
        %v533 = vadd.f32 %v385, %v532
        %v534 = vpop.f32.mrf.mxu0
        %535 = vmatprep.mubr.bf16.mxu0 0
        %536 = vmatmul.mubr.bf16.gmra.mxu0 %v428
        %v537 = vpop.f32.mrf.mxu0
        %v538 = vadd.f32 %v385, %v537
        %v539 = vpop.f32.mrf.mxu0
        %v540 = vpop.f32.mrf.mxu0
        %v541 = vadd.f32 %v385, %v540
        %v542 = vpop.f32.mrf.mxu0
        %543 = vmatprep.mubr.bf16.mxu0 0
        %544 = vmatmul.mubr.bf16.gmra.mxu0 %v429
        %v545 = vpop.f32.mrf.mxu0
        %v546 = vadd.f32 %v385, %v545
        %v547 = vpop.f32.mrf.mxu0
        %v548 = vpop.f32.mrf.mxu0
        %v549 = vadd.f32 %v385, %v548
        %v550 = vpop.f32.mrf.mxu0
        %551 = vmatprep.mubr.bf16.mxu0 0
        %552 = vmatmul.mubr.bf16.gmra.mxu0 %v430
        %v553 = vpop.f32.mrf.mxu0
        %v554 = vadd.f32 %v385, %v553
        %v555 = vpop.f32.mrf.mxu0
        %v556 = vpop.f32.mrf.mxu0
        %v557 = vadd.f32 %v385, %v556
        %v558 = vpop.f32.mrf.mxu0
        %559 = vmatprep.mubr.bf16.mxu0 0
        %560 = vmatmul.mubr.bf16.gmra.mxu0 %v431
        %v561 = vpop.f32.mrf.mxu0
        %v562 = vadd.f32 %v385, %v561
        %v563 = vpop.f32.mrf.mxu0
        %v564 = vpop.f32.mrf.mxu0
        %v565 = vadd.f32 %v385, %v564
        %v566 = vpop.f32.mrf.mxu0
        %567 = vmatprep.mubr.bf16.mxu0 0
        %568 = vmatmul.mubr.bf16.gmra.mxu0 %v432
        %v569 = vpop.f32.mrf.mxu0
        %v570 = vadd.f32 %v385, %v569
        %v571 = vpop.f32.mrf.mxu0
        %v572 = vpop.f32.mrf.mxu0
        %v573 = vadd.f32 %v385, %v572
        %v574 = vpop.f32.mrf.mxu0
        %575 = vmatprep.mubr.bf16.mxu0 0
        %576 = vmatmul.mubr.bf16.gmra.mxu0 %v433
        %v577 = vpop.f32.mrf.mxu0
        %v578 = vadd.f32 %v385, %v577
        %v579 = vpop.f32.mrf.mxu0
        %v580 = vpop.f32.mrf.mxu0
        %v581 = vadd.f32 %v385, %v580
        %v582 = vpop.f32.mrf.mxu0
        %583 = vmatprep.mubr.bf16.mxu0 0
        %584 = vmatmul.mubr.bf16.gmra.mxu0 %v434
        %v585 = vpop.f32.mrf.mxu0
        %v586 = vadd.f32 %v385, %v585
        %v587 = vpop.f32.mrf.mxu0
        %v588 = vpop.f32.mrf.mxu0
        %v589 = vadd.f32 %v385, %v588
        %v590 = vpop.f32.mrf.mxu0
        %591 = vmatprep.mubr.bf16.mxu0 0
        %592 = vmatmul.mubr.bf16.gmra.mxu0 %v435
        %v593 = vpop.f32.mrf.mxu0
        %v594 = vadd.f32 %v385, %v593
        %v595 = vpop.f32.mrf.mxu0
        %v596 = vpop.f32.mrf.mxu0
        %v597 = vadd.f32 %v385, %v596
        %v598 = vpop.f32.mrf.mxu0
        %599 = vmatprep.mubr.bf16.mxu0 0
        %600 = vmatmul.mubr.bf16.gmra.mxu0 %v436
        %v601 = vpop.f32.mrf.mxu0
        %v602 = vadd.f32 %v385, %v601
        %v603 = vpop.f32.mrf.mxu0
        %v604 = vpop.f32.mrf.mxu0
        %v605 = vadd.f32 %v385, %v604
        %v606 = vpop.f32.mrf.mxu0
        %607 = vdwg.mxu0
        %v608 = vmax.f32 %v530, 0.0
        %v609 = vmax.f32 %v533, 0.0
        %v610 = vmax.f32 %v538, 0.0
        %v611 = vmax.f32 %v541, 0.0
        %v612 = vmax.f32 %v546, 0.0
        %v613 = vmax.f32 %v549, 0.0
        %v614 = vmax.f32 %v554, 0.0
        %v615 = vmax.f32 %v557, 0.0
        %v616 = vmax.f32 %v562, 0.0
        %v617 = vmax.f32 %v565, 0.0
        %v618 = vmax.f32 %v570, 0.0
        %v619 = vmax.f32 %v573, 0.0
        %v620 = vmax.f32 %v578, 0.0
        %v621 = vmax.f32 %v581, 0.0
        %v622 = vmax.f32 %v586, 0.0
        %v623 = vmax.f32 %v589, 0.0
        %v624 = vmax.f32 %v594, 0.0
        %v625 = vmax.f32 %v597, 0.0
        %v626 = vmax.f32 %v602, 0.0
        %v627 = vmax.f32 %v605, 0.0
        %v628 = vpack.c.bf16 %v609, %v608
        %v629 = vpack.c.bf16 %v611, %v610
        %v630 = vpack.c.bf16 %v613, %v612
        %v631 = vpack.c.bf16 %v615, %v614
        %v632 = vpack.c.bf16 %v617, %v616
        %v633 = vpack.c.bf16 %v619, %v618
        %v634 = vpack.c.bf16 %v621, %v620
        %v635 = vpack.c.bf16 %v623, %v622
        %v636 = vpack.c.bf16 %v625, %v624
        %v637 = vpack.c.bf16 %v627, %v626
        %v638 = vld [vmem:[#allocation7] sm:$0xf]
        %v639 = vld [vmem:[#allocation7 + $0x4] sm:$0xf]
        %v640 = vld [vmem:[#allocation7 + $0x8] sm:$0xf]
        %v641 = vld [vmem:[#allocation7 + $0xc] sm:$0xf]
        %v642 = vld [vmem:[#allocation7 + $0x10] sm:$0xf]
        %v643 = vld [vmem:[#allocation7 + $0x14] sm:$0xf]
        %v644 = vld [vmem:[#allocation7 + $0x18] sm:$0xf]
        %v645 = vld [vmem:[#allocation7 + $0x1c] sm:$0xf]
        %v646 = vld [vmem:[#allocation7 + $0x20] sm:$0xf]
        %v647 = vld [vmem:[#allocation7 + $0x24] sm:$0xf]
        %v648 = vld [vmem:[#allocation7 + $0x28] sm:$0xf]
        %v649 = vld [vmem:[#allocation7 + $0x2c] sm:$0xf]
        %v650 = vld [vmem:[#allocation7 + $0x30] sm:$0xf]
        %v651 = vld [vmem:[#allocation7 + $0x34] sm:$0xf]
        %v652 = vld [vmem:[#allocation7 + $0x38] sm:$0xf]
        %v653 = vld [vmem:[#allocation7 + $0x3c] sm:$0xf]
        %v654 = vld [vmem:[%s4] sm:$0x1]
        %v656 = vlaneseq
        %v657 = vshrl.u32 %v656, 7
        %v658 = vsub.s32 0, %v657
        %v659 = vrot.slane %v654, %v658
        %v677 = vunpack.c.l.b16 %v638
        %v678 = vunpack.c.l.b16 %v639
        %v679 = vunpack.c.l.b16 %v640
        %v680 = vunpack.c.l.b16 %v641
        %v681 = vunpack.c.l.b16 %v642
        %v682 = vunpack.c.l.b16 %v643
        %v683 = vunpack.c.l.b16 %v644
        %v684 = vunpack.c.l.b16 %v645
        %v685 = vunpack.c.l.b16 %v646
        %v686 = vunpack.c.l.b16 %v647
        %v687 = vunpack.c.l.b16 %v648
        %v688 = vunpack.c.l.b16 %v649
        %v689 = vunpack.c.l.b16 %v650
        %v690 = vunpack.c.l.b16 %v651
        %v691 = vunpack.c.l.b16 %v652
        %v692 = vunpack.c.l.b16 %v653
        %v693 = vpack.c.b16 %v678, %v677
        %v694 = vpack.c.b16 %v680, %v679
        %v695 = vpack.c.b16 %v682, %v681
        %v696 = vpack.c.b16 %v684, %v683
        %v697 = vpack.c.b16 %v686, %v685
        %v698 = vpack.c.b16 %v688, %v687
        %v699 = vpack.c.b16 %v690, %v689
        %v700 = vpack.c.b16 %v692, %v691
        %709 = vmatprep.subr.bf16.mxu0 0
        %710 = vmatpush1.bf16.msra.mxu0 %v700
        %711 = vmatprep.subr.bf16.mxu0 0
        %712 = vmatpush1.bf16.msra.mxu0 %v699
        %713 = vmatprep.subr.bf16.mxu0 0
        %714 = vmatpush1.bf16.msra.mxu0 %v698
        %715 = vmatprep.subr.bf16.mxu0 0
        %716 = vmatpush1.bf16.msra.mxu0 %v697
        %717 = vmatprep.subr.bf16.mxu0 0
        %718 = vmatpush1.bf16.msra.mxu0 %v696
        %719 = vmatprep.subr.bf16.mxu0 0
        %720 = vmatpush1.bf16.msra.mxu0 %v695
        %721 = vmatprep.subr.bf16.mxu0 0
        %722 = vmatpush1.bf16.msra.mxu0 %v694
        %723 = vmatprep.subr.bf16.mxu0 0
        %724 = vmatpush1.bf16.msra.mxu0 %v693
        %725 = vmatprep.subr.bf16.mxu0 0
        %726 = vmatpush2.bf16.msra.mxu0 0
        %727 = vmatprep.subr.bf16.mxu0 0
        %728 = vmatpush2.bf16.msra.mxu0 0
        %729 = vmatprep.subr.bf16.mxu0 0
        %730 = vmatpush2.bf16.msra.mxu0 0
        %731 = vmatprep.subr.bf16.mxu0 0
        %732 = vmatpush2.bf16.msra.mxu0 0
        %733 = vmatprep.subr.bf16.mxu0 0
        %734 = vmatpush2.bf16.msra.mxu0 0
        %735 = vmatprep.subr.bf16.mxu0 0
        %736 = vmatpush2.bf16.msra.mxu0 0
        %737 = vmatprep.subr.bf16.mxu0 0
        %738 = vmatpush2.bf16.msra.mxu0 0
        %739 = vmatprep.subr.bf16.mxu0 0
        %740 = vmatpush2.bf16.msra.mxu0 0
        %741 = vmatprep.mubr.bf16.mxu0 0
        %742 = vmatmul.mubr.bf16.gmra.mxu0 %v628
        %v743 = vpop.f32.mrf.mxu0
        %v744 = vadd.f32 %v659, %v743
        %v745 = vpop.f32.mrf.mxu0
        %v746 = vpop.f32.mrf.mxu0
        %v747 = vadd.f32 %v659, %v746
        %v748 = vpop.f32.mrf.mxu0
        %749 = vmatprep.mubr.bf16.mxu0 0
        %750 = vmatmul.mubr.bf16.gmra.mxu0 %v629
        %v751 = vpop.f32.mrf.mxu0
        %v752 = vadd.f32 %v659, %v751
        %v753 = vpop.f32.mrf.mxu0
        %v754 = vpop.f32.mrf.mxu0
        %v755 = vadd.f32 %v659, %v754
        %v756 = vpop.f32.mrf.mxu0
        %757 = vmatprep.mubr.bf16.mxu0 0
        %758 = vmatmul.mubr.bf16.gmra.mxu0 %v630
        %v759 = vpop.f32.mrf.mxu0
        %v760 = vadd.f32 %v659, %v759
        %v761 = vpop.f32.mrf.mxu0
        %v762 = vpop.f32.mrf.mxu0
        %v763 = vadd.f32 %v659, %v762
        %v764 = vpop.f32.mrf.mxu0
        %765 = vmatprep.mubr.bf16.mxu0 0
        %766 = vmatmul.mubr.bf16.gmra.mxu0 %v631
        %v767 = vpop.f32.mrf.mxu0
        %v768 = vadd.f32 %v659, %v767
        %v769 = vpop.f32.mrf.mxu0
        %v770 = vpop.f32.mrf.mxu0
        %v771 = vadd.f32 %v659, %v770
        %v772 = vpop.f32.mrf.mxu0
        %773 = vmatprep.mubr.bf16.mxu0 0
        %774 = vmatmul.mubr.bf16.gmra.mxu0 %v632
        %v775 = vpop.f32.mrf.mxu0
        %v776 = vadd.f32 %v659, %v775
        %v777 = vpop.f32.mrf.mxu0
        %v778 = vpop.f32.mrf.mxu0
        %v779 = vadd.f32 %v659, %v778
        %v780 = vpop.f32.mrf.mxu0
        %781 = vmatprep.mubr.bf16.mxu0 0
        %782 = vmatmul.mubr.bf16.gmra.mxu0 %v633
        %v783 = vpop.f32.mrf.mxu0
        %v784 = vadd.f32 %v659, %v783
        %v785 = vpop.f32.mrf.mxu0
        %v786 = vpop.f32.mrf.mxu0
        %v787 = vadd.f32 %v659, %v786
        %v788 = vpop.f32.mrf.mxu0
        %789 = vmatprep.mubr.bf16.mxu0 0
        %790 = vmatmul.mubr.bf16.gmra.mxu0 %v634
        %v791 = vpop.f32.mrf.mxu0
        %v792 = vadd.f32 %v659, %v791
        %v793 = vpop.f32.mrf.mxu0
        %v794 = vpop.f32.mrf.mxu0
        %v795 = vadd.f32 %v659, %v794
        %v796 = vpop.f32.mrf.mxu0
        %797 = vmatprep.mubr.bf16.mxu0 0
        %798 = vmatmul.mubr.bf16.gmra.mxu0 %v635
        %v799 = vpop.f32.mrf.mxu0
        %v800 = vadd.f32 %v659, %v799
        %v801 = vpop.f32.mrf.mxu0
        %v802 = vpop.f32.mrf.mxu0
        %v803 = vadd.f32 %v659, %v802
        %v804 = vpop.f32.mrf.mxu0
        %805 = vmatprep.mubr.bf16.mxu0 0
        %806 = vmatmul.mubr.bf16.gmra.mxu0 %v636
        %v807 = vpop.f32.mrf.mxu0
        %v808 = vadd.f32 %v659, %v807
        %v809 = vpop.f32.mrf.mxu0
        %v810 = vpop.f32.mrf.mxu0
        %v811 = vadd.f32 %v659, %v810
        %v812 = vpop.f32.mrf.mxu0
        %813 = vmatprep.mubr.bf16.mxu0 0
        %814 = vmatmul.mubr.bf16.gmra.mxu0 %v637
        %v815 = vpop.f32.mrf.mxu0
        %v816 = vadd.f32 %v659, %v815
        %v817 = vpop.f32.mrf.mxu0
        %v818 = vpop.f32.mrf.mxu0
        %v819 = vadd.f32 %v659, %v818
        %v820 = vpop.f32.mrf.mxu0
        %821 = vdwg.mxu0
        %v822 = vmax.f32 %v744, 0.0
        %v823 = vmax.f32 %v747, 0.0
        %v824 = vmax.f32 %v752, 0.0
        %v825 = vmax.f32 %v755, 0.0
        %v826 = vmax.f32 %v760, 0.0
        %v827 = vmax.f32 %v763, 0.0
        %v828 = vmax.f32 %v768, 0.0
        %v829 = vmax.f32 %v771, 0.0
        %v830 = vmax.f32 %v776, 0.0
        %v831 = vmax.f32 %v779, 0.0
        %v832 = vmax.f32 %v784, 0.0
        %v833 = vmax.f32 %v787, 0.0
        %v834 = vmax.f32 %v792, 0.0
        %v835 = vmax.f32 %v795, 0.0
        %v836 = vmax.f32 %v800, 0.0
        %v837 = vmax.f32 %v803, 0.0
        %v838 = vmax.f32 %v808, 0.0
        %v839 = vmax.f32 %v811, 0.0
        %v840 = vmax.f32 %v816, 0.0
        %v841 = vmax.f32 %v819, 0.0
        %v842 = vpack.c.bf16 %v823, %v822
        %v843 = vpack.c.bf16 %v825, %v824
        %v844 = vpack.c.bf16 %v827, %v826
        %v845 = vpack.c.bf16 %v829, %v828
        %v846 = vpack.c.bf16 %v831, %v830
        %v847 = vpack.c.bf16 %v833, %v832
        %v848 = vpack.c.bf16 %v835, %v834
        %v849 = vpack.c.bf16 %v837, %v836
        %v850 = vpack.c.bf16 %v839, %v838
        %v851 = vpack.c.bf16 %v841, %v840
        %v852 = vld [vmem:[#allocation8] sm:$0xf]
        %v853 = vld [vmem:[#allocation8 + $0x4] sm:$0xf]
        %v854 = vld [vmem:[#allocation8 + $0x8] sm:$0xf]
        %v855 = vld [vmem:[#allocation8 + $0xc] sm:$0xf]
        %v856 = vld [vmem:[#allocation8 + $0x10] sm:$0xf]
        %v857 = vld [vmem:[#allocation8 + $0x14] sm:$0xf]
        %v858 = vld [vmem:[#allocation8 + $0x18] sm:$0xf]
        %v859 = vld [vmem:[#allocation8 + $0x1c] sm:$0xf]
        %v860 = vld [vmem:[#allocation8 + $0x20] sm:$0xf]
        %v861 = vld [vmem:[#allocation8 + $0x24] sm:$0xf]
        %v862 = vld [vmem:[#allocation8 + $0x28] sm:$0xf]
        %v863 = vld [vmem:[#allocation8 + $0x2c] sm:$0xf]
        %v864 = vld [vmem:[#allocation8 + $0x30] sm:$0xf]
        %v865 = vld [vmem:[#allocation8 + $0x34] sm:$0xf]
        %v866 = vld [vmem:[#allocation8 + $0x38] sm:$0xf]
        %v867 = vld [vmem:[#allocation8 + $0x3c] sm:$0xf]
        %v868 = vld [vmem:[%s6] sm:$0x1]
        %v870 = vlaneseq
        %v871 = vshrl.u32 %v870, 7
        %v872 = vsub.s32 0, %v871
        %v873 = vrot.slane %v868, %v872
        %v891 = vunpack.c.l.b16 %v852
        %v892 = vunpack.c.l.b16 %v853
        %v893 = vunpack.c.l.b16 %v854
        %v894 = vunpack.c.l.b16 %v855
        %v895 = vunpack.c.l.b16 %v856
        %v896 = vunpack.c.l.b16 %v857
        %v897 = vunpack.c.l.b16 %v858
        %v898 = vunpack.c.l.b16 %v859
        %v899 = vunpack.c.l.b16 %v860
        %v900 = vunpack.c.l.b16 %v861
        %v901 = vunpack.c.l.b16 %v862
        %v902 = vunpack.c.l.b16 %v863
        %v903 = vunpack.c.l.b16 %v864
        %v904 = vunpack.c.l.b16 %v865
        %v905 = vunpack.c.l.b16 %v866
        %v906 = vunpack.c.l.b16 %v867
        %v907 = vpack.c.b16 %v892, %v891
        %v908 = vpack.c.b16 %v894, %v893
        %v909 = vpack.c.b16 %v896, %v895
        %v910 = vpack.c.b16 %v898, %v897
        %v911 = vpack.c.b16 %v900, %v899
        %v912 = vpack.c.b16 %v902, %v901
        %v913 = vpack.c.b16 %v904, %v903
        %v914 = vpack.c.b16 %v906, %v905
        %923 = vmatprep.subr.bf16.mxu0 0
        %924 = vmatpush1.bf16.msra.mxu0 %v914
        %925 = vmatprep.subr.bf16.mxu0 0
        %926 = vmatpush1.bf16.msra.mxu0 %v913
        %927 = vmatprep.subr.bf16.mxu0 0
        %928 = vmatpush1.bf16.msra.mxu0 %v912
        %929 = vmatprep.subr.bf16.mxu0 0
        %930 = vmatpush1.bf16.msra.mxu0 %v911
        %931 = vmatprep.subr.bf16.mxu0 0
        %932 = vmatpush1.bf16.msra.mxu0 %v910
        %933 = vmatprep.subr.bf16.mxu0 0
        %934 = vmatpush1.bf16.msra.mxu0 %v909
        %935 = vmatprep.subr.bf16.mxu0 0
        %936 = vmatpush1.bf16.msra.mxu0 %v908
        %937 = vmatprep.subr.bf16.mxu0 0
        %938 = vmatpush1.bf16.msra.mxu0 %v907
        %939 = vmatprep.subr.bf16.mxu0 0
        %940 = vmatpush2.bf16.msra.mxu0 0
        %941 = vmatprep.subr.bf16.mxu0 0
        %942 = vmatpush2.bf16.msra.mxu0 0
        %943 = vmatprep.subr.bf16.mxu0 0
        %944 = vmatpush2.bf16.msra.mxu0 0
        %945 = vmatprep.subr.bf16.mxu0 0
        %946 = vmatpush2.bf16.msra.mxu0 0
        %947 = vmatprep.subr.bf16.mxu0 0
        %948 = vmatpush2.bf16.msra.mxu0 0
        %949 = vmatprep.subr.bf16.mxu0 0
        %950 = vmatpush2.bf16.msra.mxu0 0
        %951 = vmatprep.subr.bf16.mxu0 0
        %952 = vmatpush2.bf16.msra.mxu0 0
        %953 = vmatprep.subr.bf16.mxu0 0
        %954 = vmatpush2.bf16.msra.mxu0 0
        %955 = vmatprep.mubr.bf16.mxu0 0
        %956 = vmatmul.mubr.bf16.gmra.mxu0 %v842
        %v957 = vpop.f32.mrf.mxu0
        %v958 = vadd.f32 %v873, %v957
        %v959 = vpop.f32.mrf.mxu0
        %v960 = vpop.f32.mrf.mxu0
        %v961 = vadd.f32 %v873, %v960
        %v962 = vpop.f32.mrf.mxu0
        %963 = vmatprep.mubr.bf16.mxu0 0
        %964 = vmatmul.mubr.bf16.gmra.mxu0 %v843
        %v965 = vpop.f32.mrf.mxu0
        %v966 = vadd.f32 %v873, %v965
        %v967 = vpop.f32.mrf.mxu0
        %v968 = vpop.f32.mrf.mxu0
        %v969 = vadd.f32 %v873, %v968
        %v970 = vpop.f32.mrf.mxu0
        %971 = vmatprep.mubr.bf16.mxu0 0
        %972 = vmatmul.mubr.bf16.gmra.mxu0 %v844
        %v973 = vpop.f32.mrf.mxu0
        %v974 = vadd.f32 %v873, %v973
        %v975 = vpop.f32.mrf.mxu0
        %v976 = vpop.f32.mrf.mxu0
        %v977 = vadd.f32 %v873, %v976
        %v978 = vpop.f32.mrf.mxu0
        %979 = vmatprep.mubr.bf16.mxu0 0
        %980 = vmatmul.mubr.bf16.gmra.mxu0 %v845
        %v981 = vpop.f32.mrf.mxu0
        %v982 = vadd.f32 %v873, %v981
        %v983 = vpop.f32.mrf.mxu0
        %v984 = vpop.f32.mrf.mxu0
        %v985 = vadd.f32 %v873, %v984
        %v986 = vpop.f32.mrf.mxu0
        %987 = vmatprep.mubr.bf16.mxu0 0
        %988 = vmatmul.mubr.bf16.gmra.mxu0 %v846
        %v989 = vpop.f32.mrf.mxu0
        %v990 = vadd.f32 %v873, %v989
        %v991 = vpop.f32.mrf.mxu0
        %v992 = vpop.f32.mrf.mxu0
        %v993 = vadd.f32 %v873, %v992
        %v994 = vpop.f32.mrf.mxu0
        %995 = vmatprep.mubr.bf16.mxu0 0
        %996 = vmatmul.mubr.bf16.gmra.mxu0 %v847
        %v997 = vpop.f32.mrf.mxu0
        %v998 = vadd.f32 %v873, %v997
        %v999 = vpop.f32.mrf.mxu0
        %v1000 = vpop.f32.mrf.mxu0
        %v1001 = vadd.f32 %v873, %v1000
        %v1002 = vpop.f32.mrf.mxu0
        %1003 = vmatprep.mubr.bf16.mxu0 0
        %1004 = vmatmul.mubr.bf16.gmra.mxu0 %v848
        %v1005 = vpop.f32.mrf.mxu0
        %v1006 = vadd.f32 %v873, %v1005
        %v1007 = vpop.f32.mrf.mxu0
        %v1008 = vpop.f32.mrf.mxu0
        %v1009 = vadd.f32 %v873, %v1008
        %v1010 = vpop.f32.mrf.mxu0
        %1011 = vmatprep.mubr.bf16.mxu0 0
        %1012 = vmatmul.mubr.bf16.gmra.mxu0 %v849
        %v1013 = vpop.f32.mrf.mxu0
        %v1014 = vadd.f32 %v873, %v1013
        %v1015 = vpop.f32.mrf.mxu0
        %v1016 = vpop.f32.mrf.mxu0
        %v1017 = vadd.f32 %v873, %v1016
        %v1018 = vpop.f32.mrf.mxu0
        %1019 = vmatprep.mubr.bf16.mxu0 0
        %1020 = vmatmul.mubr.bf16.gmra.mxu0 %v850
        %v1021 = vpop.f32.mrf.mxu0
        %v1022 = vadd.f32 %v873, %v1021
        %v1023 = vpop.f32.mrf.mxu0
        %v1024 = vpop.f32.mrf.mxu0
        %v1025 = vadd.f32 %v873, %v1024
        %v1026 = vpop.f32.mrf.mxu0
        %1027 = vmatprep.mubr.bf16.mxu0 0
        %1028 = vmatmul.mubr.bf16.gmra.mxu0 %v851
        %v1029 = vpop.f32.mrf.mxu0
        %v1030 = vadd.f32 %v873, %v1029
        %v1031 = vpop.f32.mrf.mxu0
        %v1032 = vpop.f32.mrf.mxu0
        %v1033 = vadd.f32 %v873, %v1032
        %v1034 = vpop.f32.mrf.mxu0
        %1035 = vdwg.mxu0
        %1036 = vst [vmem:[%s340] sm:$0xff] %v958
        %1037 = vst [vmem:[%s340 + $0x8] sm:$0xff] %v961
        %1038 = vst [vmem:[%s340 + $0x10] sm:$0xff] %v966
        %1039 = vst [vmem:[%s340 + $0x18] sm:$0xff] %v969
        %1040 = vst [vmem:[%s340 + $0x20] sm:$0xff] %v974
        %1041 = vst [vmem:[%s340 + $0x28] sm:$0xff] %v977
        %1042 = vst [vmem:[%s340 + $0x30] sm:$0xff] %v982
        %1043 = vst [vmem:[%s340 + $0x38] sm:$0xff] %v985
        %1044 = vst [vmem:[%s340 + $0x40] sm:$0xff] %v990
        %1045 = vst [vmem:[%s340 + $0x48] sm:$0xff] %v993
        %1046 = vst [vmem:[%s340 + $0x50] sm:$0xff] %v998
        %1047 = vst [vmem:[%s340 + $0x58] sm:$0xff] %v1001
        %1048 = vst [vmem:[%s340 + $0x60] sm:$0xff] %v1006
        %1049 = vst [vmem:[%s340 + $0x68] sm:$0xff] %v1009
        %1050 = vst [vmem:[%s340 + $0x70] sm:$0xff] %v1014
        %1051 = vst [vmem:[%s340 + $0x78] sm:$0xff] %v1017
        %1052 = vst [vmem:[%s340 + $0x80] sm:$0xff] %v1022
        %1053 = vst [vmem:[%s340 + $0x88] sm:$0xff] %v1025
        %1054 = vst [vmem:[%s340 + $0x90] sm:$0xff] %v1030
        %1055 = vst [vmem:[%s340 + $0x98] sm:$0xff] %v1033
        %s1056 = sand.u32 %s186, 1
        %s1057 = scalar_lea.sflag [#allocation4], %s1056
        %s1058 = sand.u32 %s186, 1
        %s1059 = smul.addr %s1058, 160
        %s1060 = scalar_lea.vmem [#allocation10], %s1059
        // Predicated region
        $region65: #{tpu_custom_call.1} parent=47 // pred_check
          %p1061 = pneg %p196
        $region66: #{tpu_custom_call.1} parent=47 // pred_check_branch
          %1063 = sbr.rel (%p1061) target = $region68
        $region67: #{tpu_custom_call.1} parent=47 // pred_region
          %s1064 = smul.u32 20, %s26
          %s1066 = ssub.s32 2560, 2560
          %1067 = vsyncadd %s1057, %s1066
          %s1068 = smul.addr %s1064, 128
          %s1069 = scalar_lea.hbm %s7, %s1068
          %s1070 = sshll.u32 %s1060, 4
          %s1071 = int_to_ptr.vmem [resolvable:$true] %s1070
          %1076 = dma.vmem_to_hbm [thread:$0]  %s1071, 2560, %s1069, %s1057, 128, 128, 8
        $region68: #{tpu_custom_call.1} parent=47 // pred_fallthru
          _
      $region48: #{tpu_custom_call.1} parent=5 // pred_fallthru
        _
      %p1077 = scmp.le.s32.totalorder 2, %s21
      // Predicated region
      $region69: #{tpu_custom_call.1} parent=5 // pred_check
        %p1078 = pneg %p1077
      $region70: #{tpu_custom_call.1} parent=5 // pred_check_branch
        %1080 = sbr.rel (%p1078) target = $region72
      $region71: #{tpu_custom_call.1} parent=5 // pred_region
        %s1081 = ssub.s32 %s21, 2
        // Predicated region
        $region73: #{tpu_custom_call.1} parent=71 // pred_check
          %p1082 = pneg %p202
        $region74: #{tpu_custom_call.1} parent=71 // pred_check_branch
          %1084 = sbr.rel (%p1082) target = $region76
        $region75: #{tpu_custom_call.1} parent=71 // pred_region
          %s1085 = sand.u32 %s187, 1
          %s1086 = scalar_lea.sflag [#allocation4], %s1085
          %s1087 = sand.u32 %s187, 1
          %s1088 = smul.addr %s1087, 160
          %s1089 = scalar_lea.vmem [#allocation10], %s1088
          %1090 = dma.done %s1086, 2560
        $region76: #{tpu_custom_call.1} parent=71 // pred_fallthru
          _
      $region72: #{tpu_custom_call.1} parent=5 // pred_fallthru
        _
    $region6: #{tpu_custom_call.1} parent=1 // loop_footer
      %s25 = sadd.s32 1, %s21
    $region7: #{tpu_custom_call.1} parent=1 // loop_footer_branch
      %20 = sbr.rel target = $region3
    $region8: #{tpu_custom_call.1} parent=1 // loop_exit
      _
    %1091 = vsyncpa [#allocation3], 1
    %s1092 = scalar_lea.sflag [#allocation3], 1
    %1093 = vsyncpa %s1092, 1
    %1094 = vsyncpa [#allocation6], 1
    %1095 = vsyncpa [#allocation9], 1
    %1096 = vsyncpa [#allocation4], 1
    %s1097 = scalar_lea.sflag [#allocation4], 1
    %1098 = vsyncpa %s1097, 1

</llo_original>
